<compile_context>
chip_gen: v5e
topology: v5e:2x2
jax: 0.10.0
libtpu: 0.0.40
codegen_flags: <defaults>
</compile_context>

<pallas_src>
import functools
import math

import jax
import jax.numpy as jnp
from jax.experimental import pallas as pl
from jax.experimental.pallas import tpu as pltpu


def _round_up(x, m):
    return (x + m - 1) // m * m


def _vmem_budget():
    """Generation-aware (budget, vmem_limit, has_two_tensorcores)."""
    cap = 128 * 1024 * 1024
    try:
        cap = int(pltpu.get_tpu_info().vmem_capacity_bytes)
    except Exception:
        pass
    if cap <= 64 * 1024 * 1024:            # v7x: 64 MiB per TC, 2 TCs / chip
        return 40 << 20, 48 << 20, True
    return 96 << 20, 112 << 20, False      # v5e / v6e: 128 MiB, 1 TC / chip


def _pred_head_kernel(x_ref, w1_ref, lnp_ref, w2_ref, b2_ref, o_ref, *, approximate_gelu):
    # --- Linear 1 (dim -> hidden): native-dtype MXU operands, fp32 accumulation ---
    h = jnp.dot(x_ref[...], w1_ref[...], preferred_element_type=jnp.float32)

    b1 = lnp_ref[0:1, :].astype(jnp.float32)
    gamma = lnp_ref[1:2, :].astype(jnp.float32)
    beta = lnp_ref[2:3, :].astype(jnp.float32)
    h = h + b1

    # --- LayerNorm (fp32, eps=1e-5, matching the fp16-safe subclass) ---
    mu = jnp.mean(h, axis=-1, keepdims=True)
    d = h - mu
    var = jnp.mean(d * d, axis=-1, keepdims=True)
    hn = d * jax.lax.rsqrt(var + 1e-5)
    hn = hn * gamma + beta

    # --- GELU ---
    if approximate_gelu:
        act = jax.nn.gelu(hn, approximate=True)        # tanh -> EUP slot
    else:
        act = 0.5 * hn * (1.0 + jax.lax.erf(hn * (1.0 / math.sqrt(2.0))))  # exact (nn.GELU default)

    # --- Linear 2 (hidden -> proj_padded): cast activation to weight dtype for MXU ---
    out = jnp.dot(act.astype(w2_ref.dtype), w2_ref[...],
                  preferred_element_type=jnp.float32)
    out = out + b2_ref[...].astype(jnp.float32)
    o_ref[...] = out.astype(o_ref.dtype)


def pack_pred_head_params(w1, b1, gamma, beta, w2, b2):
    """One-time parameter prep (call at init time, NOT per forward).

    w1: (dim, hidden), w2: (hidden, proj) (already transposed vs. PyTorch);
    b1/gamma/beta: (1, hidden); b2: (1, proj).
    """
    proj = w2.shape[1]
    proj_p = max(_round_up(proj, 128), 128)            # lane-dense output (full vst)
    if proj_p != proj:
        w2 = jnp.pad(w2, ((0, 0), (0, proj_p - proj)))
        b2 = jnp.pad(b2, ((0, 0), (0, proj_p - proj)))
    # Pin to fp32 so mixed-precision params never silently promote; LN/GELU is fp32 anyway.
    lnp = jnp.concatenate([b1, gamma, beta], axis=0).astype(jnp.float32)
    return {"w1": w1, "lnp": lnp, "w2": w2, "b2": b2, "proj": proj}


def _auto_block_rows(rows, dim, hidden, proj_p, x_isz, out_isz, w1_isz, w2_isz,
                     sublane, budget, two_tc):
    """Largest row tile that fits the per-generation VMEM budget."""
    # Resident operands are single-buffered (pl.Buffered(1), constant index_map).
    weight_bytes = (dim * hidden * w1_isz
                    + hidden * proj_p * w2_isz
                    + 3 * hidden * 4                    # lnp is fp32
                    + proj_p * w2_isz)
    # Per-row cost: x tile (x2 buffers) + out tile (x2 buffers) + fp32 intermediates
    # (h, d, hn, act) + the act cast to the W2 dtype.
    per_row = (2 * dim * x_isz
               + 2 * proj_p * out_isz
               + 4 * hidden * 4
               + hidden * w2_isz)
    per_row = int(per_row * 1.15)                       # slack for compiler temporaries
    avail = max(budget - weight_bytes, per_row * sublane)
    br = avail // per_row
    br = min(br, 1024)                                  # diminishing returns beyond ~1k rows
    if two_tc:                                          # only split for megacore (v7x)
        br = min(br, _round_up(pl.cdiv(rows, 2), sublane))
    if br >= 128:
        br = (br // 128) * 128                          # MXU-friendly M tiles
    else:
        br = max((br // sublane) * sublane, sublane)
    return int(br)


def pred_head(x, params, *, block_rows=None, approximate_gelu=False):
    """x: (rows, dim). params: output of pack_pred_head_params()."""
    rows, dim = x.shape
    w1, lnp, w2, b2 = params["w1"], params["lnp"], params["w2"], params["b2"]
    proj = params["proj"]
    hidden = w1.shape[1]
    proj_p = w2.shape[1]
    out_dtype = x.dtype

    budget, vmem_limit, two_tc = _vmem_budget()
    x_isz = jnp.dtype(x.dtype).itemsize
    sublane = 8 * max(1, 4 // x_isz)                    # 8 for fp32, 16 for bf16

    if block_rows is None:
        br_max = _auto_block_rows(rows, dim, hidden, proj_p, x_isz,
                                  jnp.dtype(out_dtype).itemsize,
                                  jnp.dtype(w1.dtype).itemsize,
                                  jnp.dtype(w2.dtype).itemsize,
                                  sublane, budget, two_tc)
    else:
        br_max = max(sublane, _round_up(int(block_rows), sublane))

    # Balanced ceiling-division: at most ~one sublane of padding per tile instead of
    # rounding rows up to a full br_max multiple.
    n_steps = max(1, pl.cdiv(rows, br_max))
    block_rows = _round_up(pl.cdiv(rows, n_steps), sublane)
    rows_p = block_rows * n_steps
    if rows_p != rows:
        # TODO(synk): replace this residual pad with a masked tail tile / second small
        #             pallas_call so the wrapper never rewrites x in HBM.
        x = jnp.pad(x, ((0, rows_p - rows), (0, 0)))

    def build(single_buffer_weights):
        resident = {"pipeline_mode": pl.Buffered(1)} if single_buffer_weights else {}
        return pl.pallas_call(
            functools.partial(_pred_head_kernel, approximate_gelu=approximate_gelu),
            out_shape=jax.ShapeDtypeStruct((rows_p, proj_p), out_dtype),
            grid_spec=pltpu.PrefetchScalarGridSpec(
                num_scalar_prefetch=0,
                grid=(n_steps,),
                in_specs=[
                    pl.BlockSpec((block_rows, dim), lambda i: (i, 0)),              # x tile
                    pl.BlockSpec((dim, hidden),     lambda i: (0, 0), **resident),  # W1 (resident)
                    pl.BlockSpec((3, hidden),       lambda i: (0, 0), **resident),  # [b1; gamma; beta]
                    pl.BlockSpec((hidden, proj_p),  lambda i: (0, 0), **resident),  # W2 (lane-padded)
                    pl.BlockSpec((1, proj_p),       lambda i: (0, 0), **resident),  # b2 (lane-padded)
                ],
                out_specs=pl.BlockSpec((block_rows, proj_p), lambda i: (i, 0)),
            ),
            compiler_params=pltpu.CompilerParams(
                dimension_semantics=("parallel",),
                vmem_limit_bytes=vmem_limit,
            ),
        )

    try:
        out = build(True)(x, w1, lnp, w2, b2)
    except Exception:
        # Fallback if this runtime rejects Buffered(1) on resident operands.
        out = build(False)(x, w1, lnp, w2, b2)

    if rows_p != rows or proj_p != proj:
        out = out[:rows, :proj]
    return out


def _reference(x, w1, b1, gamma, beta, w2, b2):
    h = x.astype(jnp.float32) @ w1.astype(jnp.float32) + b1.astype(jnp.float32)
    mu = jnp.mean(h, axis=-1, keepdims=True)
    var = jnp.mean((h - mu) ** 2, axis=-1, keepdims=True)
    hn = (h - mu) * jax.lax.rsqrt(var + 1e-5)
    hn = hn * gamma.astype(jnp.float32) + beta.astype(jnp.float32)
    act = 0.5 * hn * (1.0 + jax.lax.erf(hn / jnp.sqrt(2.0)))
    return (act @ w2.astype(jnp.float32) + b2.astype(jnp.float32)).astype(x.dtype)


if __name__ == "__main__":
    # Small shapes consistent with the module: dim=32, mlp_hidden_size=64, projection_size=16.
    batch, seq, dim, hidden, proj = 2, 8, 32, 64, 16

    key = jax.random.PRNGKey(0)
    kx, kw1, kb1, kw2, kb2 = jax.random.split(key, 5)

    x = jax.random.normal(kx, (batch, seq, dim), dtype=jnp.float32)

    # Deterministic parameter init (PyTorch-style uniform bounds for Linear; LN gamma=1, beta=0).
    lim1 = 1.0 / math.sqrt(dim)
    w1 = jax.random.uniform(kw1, (dim, hidden), minval=-lim1, maxval=lim1, dtype=jnp.float32)
    b1 = jax.random.uniform(kb1, (1, hidden), minval=-lim1, maxval=lim1, dtype=jnp.float32)
    gamma = jnp.ones((1, hidden), dtype=jnp.float32)
    beta = jnp.zeros((1, hidden), dtype=jnp.float32)
    lim2 = 1.0 / math.sqrt(hidden)
    w2 = jax.random.uniform(kw2, (hidden, proj), minval=-lim2, maxval=lim2, dtype=jnp.float32)
    b2 = jax.random.uniform(kb2, (1, proj), minval=-lim2, maxval=lim2, dtype=jnp.float32)

    # One-time parameter packing (hoisted out of the per-forward hot path).
    params = pack_pred_head_params(w1, b1, gamma, beta, w2, b2)

    # Flatten leading dims (PyTorch Linear operates on the last dim).
    x2d = x.reshape(batch * seq, dim)

    out = pred_head(x2d, params)            # block_rows auto-derived from VMEM budget
    out = out.reshape(batch, seq, proj)
    jax.block_until_ready(out)

    ref = _reference(x2d, w1, b1, gamma, beta, w2, b2).reshape(batch, seq, proj)
    assert out.shape == (batch, seq, proj)
    # NOTE: 1e-5 tolerance is for fp32 runs; loosen for bf16 (native-dtype MXU operands).
    assert jnp.allclose(out, ref, atol=1e-5, rtol=1e-5), "mismatch vs. reference"

    print("KERNEL_OK")
</pallas_src>

<mosaic_0001>
module attributes {stable_mosaic.version = 11 : i64} {
  func.func @_pred_head_kernel(%arg0: i32, %arg1: memref<16x32xf32, #tpu.memory_space<vmem>>, %arg2: memref<32x64xf32, #tpu.memory_space<vmem>>, %arg3: memref<3x64xf32, #tpu.memory_space<vmem>>, %arg4: memref<64x128xf32, #tpu.memory_space<vmem>>, %arg5: memref<1x128xf32, #tpu.memory_space<vmem>>, %arg6: memref<16x128xf32, #tpu.memory_space<vmem>>) attributes {dimension_semantics = [#tpu.dimension_semantics<parallel>], iteration_bounds = array<i64: 1>, scalar_prefetch = 0 : i64, scratch_operands = 0 : i64, tpu.core_type = #tpu.core_type<tc>, window_params = [{transform_indices = @transform_0, window_bounds = array<i64: 16, 32>}, {pipeline_mode = #tpu.pipeline_mode<synchronous>, transform_indices = @transform_1, window_bounds = array<i64: 32, 64>}, {pipeline_mode = #tpu.pipeline_mode<synchronous>, transform_indices = @transform_2, window_bounds = array<i64: 3, 64>}, {pipeline_mode = #tpu.pipeline_mode<synchronous>, transform_indices = @transform_3, window_bounds = array<i64: 64, 128>}, {pipeline_mode = #tpu.pipeline_mode<synchronous>, transform_indices = @transform_4, window_bounds = array<i64: 1, 128>}, {transform_indices = @transform_5, window_bounds = array<i64: 16, 128>}]} {
    %c0 = arith.constant 0 : index
    %c0_0 = arith.constant 0 : index
    %0 = vector.load %arg1[%c0, %c0_0] : memref<16x32xf32, #tpu.memory_space<vmem>>, vector<16x32xf32>
    %c0_1 = arith.constant 0 : index
    %c0_2 = arith.constant 0 : index
    %1 = vector.load %arg2[%c0_1, %c0_2] : memref<32x64xf32, #tpu.memory_space<vmem>>, vector<32x64xf32>
    %cst = arith.constant dense<0.000000e+00> : vector<16x64xf32>
    %2 = tpu.matmul %0, %1, %cst {dimension_numbers = #tpu.dot_dimension_numbers<[1], [0], [0], [1], [0, 0, 1, 1], [], []>} : vector<16x32xf32>, vector<32x64xf32>, vector<16x64xf32> -> vector<16x64xf32>
    %c0_3 = arith.constant 0 : index
    %c0_4 = arith.constant 0 : index
    %3 = vector.load %arg3[%c0_3, %c0_4] : memref<3x64xf32, #tpu.memory_space<vmem>>, vector<1x64xf32>
    %c1 = arith.constant 1 : index
    %c0_5 = arith.constant 0 : index
    %4 = vector.load %arg3[%c1, %c0_5] : memref<3x64xf32, #tpu.memory_space<vmem>>, vector<1x64xf32>
    %c2 = arith.constant 2 : index
    %c0_6 = arith.constant 0 : index
    %5 = vector.load %arg3[%c2, %c0_6] : memref<3x64xf32, #tpu.memory_space<vmem>>, vector<1x64xf32>
    %6 = vector.broadcast %3 : vector<1x64xf32> to vector<16x64xf32>
    %7 = arith.addf %2, %6 : vector<16x64xf32>
    %cst_7 = arith.constant dense<0.000000e+00> : vector<16xf32>
    %8 = vector.multi_reduction <add>, %7, %cst_7 [1] : vector<16x64xf32> to vector<16xf32>
    %9 = vector.shape_cast %8 : vector<16xf32> to vector<16x1xf32>
    %cst_8 = arith.constant 6.400000e+01 : f32
    %10 = vector.broadcast %cst_8 : f32 to vector<16x1xf32>
    %11 = arith.divf %9, %10 : vector<16x1xf32>
    %12 = vector.broadcast %11 : vector<16x1xf32> to vector<16x64xf32>
    %13 = arith.subf %7, %12 : vector<16x64xf32>
    %14 = arith.mulf %13, %13 : vector<16x64xf32>
    %cst_9 = arith.constant dense<0.000000e+00> : vector<16xf32>
    %15 = vector.multi_reduction <add>, %14, %cst_9 [1] : vector<16x64xf32> to vector<16xf32>
    %16 = vector.shape_cast %15 : vector<16xf32> to vector<16x1xf32>
    %cst_10 = arith.constant 6.400000e+01 : f32
    %17 = vector.broadcast %cst_10 : f32 to vector<16x1xf32>
    %18 = arith.divf %16, %17 : vector<16x1xf32>
    %cst_11 = arith.constant 9.99999974E-6 : f32
    %19 = vector.broadcast %cst_11 : f32 to vector<16x1xf32>
    %20 = arith.addf %18, %19 : vector<16x1xf32>
    %21 = math.rsqrt %20 : vector<16x1xf32>
    %22 = vector.broadcast %21 : vector<16x1xf32> to vector<16x64xf32>
    %23 = arith.mulf %13, %22 : vector<16x64xf32>
    %24 = vector.broadcast %4 : vector<1x64xf32> to vector<16x64xf32>
    %25 = arith.mulf %23, %24 : vector<16x64xf32>
    %26 = vector.broadcast %5 : vector<1x64xf32> to vector<16x64xf32>
    %27 = arith.addf %25, %26 : vector<16x64xf32>
    %cst_12 = arith.constant 5.000000e-01 : f32
    %28 = vector.broadcast %cst_12 : f32 to vector<16x64xf32>
    %29 = arith.mulf %28, %27 : vector<16x64xf32>
    %cst_13 = arith.constant 0.707106769 : f32
    %30 = vector.broadcast %cst_13 : f32 to vector<16x64xf32>
    %31 = arith.mulf %27, %30 : vector<16x64xf32>
    %32 = math.erf %31 : vector<16x64xf32>
    %cst_14 = arith.constant 1.000000e+00 : f32
    %33 = vector.broadcast %cst_14 : f32 to vector<16x64xf32>
    %34 = arith.addf %33, %32 : vector<16x64xf32>
    %35 = arith.mulf %29, %34 : vector<16x64xf32>
    %c0_15 = arith.constant 0 : index
    %c0_16 = arith.constant 0 : index
    %36 = vector.load %arg4[%c0_15, %c0_16] : memref<64x128xf32, #tpu.memory_space<vmem>>, vector<64x128xf32>
    %cst_17 = arith.constant dense<0.000000e+00> : vector<16x128xf32>
    %37 = tpu.matmul %35, %36, %cst_17 {dimension_numbers = #tpu.dot_dimension_numbers<[1], [0], [0], [1], [0, 0, 1, 1], [], []>} : vector<16x64xf32>, vector<64x128xf32>, vector<16x128xf32> -> vector<16x128xf32>
    %c0_18 = arith.constant 0 : index
    %c0_19 = arith.constant 0 : index
    %38 = vector.load %arg5[%c0_18, %c0_19] : memref<1x128xf32, #tpu.memory_space<vmem>>, vector<1x128xf32>
    %39 = vector.broadcast %38 : vector<1x128xf32> to vector<16x128xf32>
    %40 = arith.addf %37, %39 : vector<16x128xf32>
    %c0_20 = arith.constant 0 : index
    %c0_21 = arith.constant 0 : index
    %41 = vector.load %arg6[%c0_20, %c0_21] : memref<16x128xf32, #tpu.memory_space<vmem>>, vector<16x128xf32>
    tpu.vector_store %arg6[%c0_20, %c0_21], %40 {strides = array<i32>} : memref<16x128xf32, #tpu.memory_space<vmem>>, vector<16x128xf32>,
    return
  }
  func.func @transform_0(%arg0: i32) -> (i32, i32) {
    %c0_i32 = arith.constant 0 : i32
    %c0_i32_0 = arith.constant 0 : i32
    return %arg0, %c0_i32 : i32, i32
  }
  func.func @transform_1(%arg0: i32) -> (i32, i32) {
    %c0_i32 = arith.constant 0 : i32
    %c0_i32_0 = arith.constant 0 : i32
    %c0_i32_1 = arith.constant 0 : i32
    return %c0_i32, %c0_i32_0 : i32, i32
  }
  func.func @transform_2(%arg0: i32) -> (i32, i32) {
    %c0_i32 = arith.constant 0 : i32
    %c0_i32_0 = arith.constant 0 : i32
    %c0_i32_1 = arith.constant 0 : i32
    return %c0_i32, %c0_i32_0 : i32, i32
  }
  func.func @transform_3(%arg0: i32) -> (i32, i32) {
    %c0_i32 = arith.constant 0 : i32
    %c0_i32_0 = arith.constant 0 : i32
    %c0_i32_1 = arith.constant 0 : i32
    return %c0_i32, %c0_i32_0 : i32, i32
  }
  func.func @transform_4(%arg0: i32) -> (i32, i32) {
    %c0_i32 = arith.constant 0 : i32
    %c0_i32_0 = arith.constant 0 : i32
    %c0_i32_1 = arith.constant 0 : i32
    return %c0_i32, %c0_i32_0 : i32, i32
  }
  func.func @transform_5(%arg0: i32) -> (i32, i32) {
    %c0_i32 = arith.constant 0 : i32
    %c0_i32_0 = arith.constant 0 : i32
    return %arg0, %c0_i32 : i32, i32
  }
}

module attributes {stable_mosaic.version = 11 : i64} {
  func.func @_pred_head_kernel(%arg0: i32, %arg1: memref<16x32xf32, #tpu.memory_space<vmem>>, %arg2: memref<32x64xf32, #tpu.memory_space<vmem>>, %arg3: memref<3x64xf32, #tpu.memory_space<vmem>>, %arg4: memref<64x128xf32, #tpu.memory_space<vmem>>, %arg5: memref<1x128xf32, #tpu.memory_space<vmem>>, %arg6: memref<16x128xf32, #tpu.memory_space<vmem>>) attributes {dimension_semantics = [#tpu.dimension_semantics<parallel>], iteration_bounds = array<i64: 1>, scalar_prefetch = 0 : i64, scratch_operands = 0 : i64, tpu.core_type = #tpu.core_type<tc>, window_params = [{transform_indices = @transform_0, window_bounds = array<i64: 16, 32>}, {pipeline_mode = #tpu.pipeline_mode<synchronous>, transform_indices = @transform_1, window_bounds = array<i64: 32, 64>}, {pipeline_mode = #tpu.pipeline_mode<synchronous>, transform_indices = @transform_2, window_bounds = array<i64: 3, 64>}, {pipeline_mode = #tpu.pipeline_mode<synchronous>, transform_indices = @transform_3, window_bounds = array<i64: 64, 128>}, {pipeline_mode = #tpu.pipeline_mode<synchronous>, transform_indices = @transform_4, window_bounds = array<i64: 1, 128>}, {transform_indices = @transform_5, window_bounds = array<i64: 16, 128>}]} {
    %c0 = arith.constant 0 : index
    %c0_0 = arith.constant 0 : index
    %0 = vector.load %arg1[%c0, %c0_0] : memref<16x32xf32, #tpu.memory_space<vmem>>, vector<16x32xf32>
    %c0_1 = arith.constant 0 : index
    %c0_2 = arith.constant 0 : index
    %1 = vector.load %arg2[%c0_1, %c0_2] : memref<32x64xf32, #tpu.memory_space<vmem>>, vector<32x64xf32>
    %cst = arith.constant dense<0.000000e+00> : vector<16x64xf32>
    %2 = tpu.matmul %0, %1, %cst {dimension_numbers = #tpu.dot_dimension_numbers<[1], [0], [0], [1], [0, 0, 1, 1], [], []>} : vector<16x32xf32>, vector<32x64xf32>, vector<16x64xf32> -> vector<16x64xf32>
    %c0_3 = arith.constant 0 : index
    %c0_4 = arith.constant 0 : index
    %3 = vector.load %arg3[%c0_3, %c0_4] : memref<3x64xf32, #tpu.memory_space<vmem>>, vector<1x64xf32>
    %c1 = arith.constant 1 : index
    %c0_5 = arith.constant 0 : index
    %4 = vector.load %arg3[%c1, %c0_5] : memref<3x64xf32, #tpu.memory_space<vmem>>, vector<1x64xf32>
    %c2 = arith.constant 2 : index
    %c0_6 = arith.constant 0 : index
    %5 = vector.load %arg3[%c2, %c0_6] : memref<3x64xf32, #tpu.memory_space<vmem>>, vector<1x64xf32>
    %6 = vector.broadcast %3 : vector<1x64xf32> to vector<16x64xf32>
    %7 = arith.addf %2, %6 : vector<16x64xf32>
    %cst_7 = arith.constant dense<0.000000e+00> : vector<16xf32>
    %8 = vector.multi_reduction <add>, %7, %cst_7 [1] : vector<16x64xf32> to vector<16xf32>
    %9 = vector.shape_cast %8 : vector<16xf32> to vector<16x1xf32>
    %cst_8 = arith.constant 6.400000e+01 : f32
    %10 = vector.broadcast %cst_8 : f32 to vector<16x1xf32>
    %11 = arith.divf %9, %10 : vector<16x1xf32>
    %12 = vector.broadcast %11 : vector<16x1xf32> to vector<16x64xf32>
    %13 = arith.subf %7, %12 : vector<16x64xf32>
    %14 = arith.mulf %13, %13 : vector<16x64xf32>
    %cst_9 = arith.constant dense<0.000000e+00> : vector<16xf32>
    %15 = vector.multi_reduction <add>, %14, %cst_9 [1] : vector<16x64xf32> to vector<16xf32>
    %16 = vector.shape_cast %15 : vector<16xf32> to vector<16x1xf32>
    %cst_10 = arith.constant 6.400000e+01 : f32
    %17 = vector.broadcast %cst_10 : f32 to vector<16x1xf32>
    %18 = arith.divf %16, %17 : vector<16x1xf32>
    %cst_11 = arith.constant 9.99999974E-6 : f32
    %19 = vector.broadcast %cst_11 : f32 to vector<16x1xf32>
    %20 = arith.addf %18, %19 : vector<16x1xf32>
    %21 = math.rsqrt %20 : vector<16x1xf32>
    %22 = vector.broadcast %21 : vector<16x1xf32> to vector<16x64xf32>
    %23 = arith.mulf %13, %22 : vector<16x64xf32>
    %24 = vector.broadcast %4 : vector<1x64xf32> to vector<16x64xf32>
    %25 = arith.mulf %23, %24 : vector<16x64xf32>
    %26 = vector.broadcast %5 : vector<1x64xf32> to vector<16x64xf32>
    %27 = arith.addf %25, %26 : vector<16x64xf32>
    %cst_12 = arith.constant 5.000000e-01 : f32
    %28 = vector.broadcast %cst_12 : f32 to vector<16x64xf32>
    %29 = arith.mulf %28, %27 : vector<16x64xf32>
    %cst_13 = arith.constant 0.707106769 : f32
    %30 = vector.broadcast %cst_13 : f32 to vector<16x64xf32>
    %31 = arith.mulf %27, %30 : vector<16x64xf32>
    %32 = math.erf %31 : vector<16x64xf32>
    %cst_14 = arith.constant 1.000000e+00 : f32
    %33 = vector.broadcast %cst_14 : f32 to vector<16x64xf32>
    %34 = arith.addf %33, %32 : vector<16x64xf32>
    %35 = arith.mulf %29, %34 : vector<16x64xf32>
    %c0_15 = arith.constant 0 : index
    %c0_16 = arith.constant 0 : index
    %36 = vector.load %arg4[%c0_15, %c0_16] : memref<64x128xf32, #tpu.memory_space<vmem>>, vector<64x128xf32>
    %cst_17 = arith.constant dense<0.000000e+00> : vector<16x128xf32>
    %37 = tpu.matmul %35, %36, %cst_17 {dimension_numbers = #tpu.dot_dimension_numbers<[1], [0], [0], [1], [0, 0, 1, 1], [], []>} : vector<16x64xf32>, vector<64x128xf32>, vector<16x128xf32> -> vector<16x128xf32>
    %c0_18 = arith.constant 0 : index
    %c0_19 = arith.constant 0 : index
    %38 = vector.load %arg5[%c0_18, %c0_19] : memref<1x128xf32, #tpu.memory_space<vmem>>, vector<1x128xf32>
    %39 = vector.broadcast %38 : vector<1x128xf32> to vector<16x128xf32>
    %40 = arith.addf %37, %39 : vector<16x128xf32>
    %c0_20 = arith.constant 0 : index
    %c0_21 = arith.constant 0 : index
    %41 = vector.load %arg6[%c0_20, %c0_21] : memref<16x128xf32, #tpu.memory_space<vmem>>, vector<16x128xf32>
    tpu.vector_store %arg6[%c0_20, %c0_21], %40 {strides = array<i32>} : memref<16x128xf32, #tpu.memory_space<vmem>>, vector<16x128xf32>,
    return
  }
  func.func @transform_0(%arg0: i32) -> (i32, i32) {
    %c0_i32 = arith.constant 0 : i32
    %c0_i32_0 = arith.constant 0 : i32
    return %arg0, %c0_i32 : i32, i32
  }
  func.func @transform_1(%arg0: i32) -> (i32, i32) {
    %c0_i32 = arith.constant 0 : i32
    %c0_i32_0 = arith.constant 0 : i32
    %c0_i32_1 = arith.constant 0 : i32
    return %c0_i32, %c0_i32_0 : i32, i32
  }
  func.func @transform_2(%arg0: i32) -> (i32, i32) {
    %c0_i32 = arith.constant 0 : i32
    %c0_i32_0 = arith.constant 0 : i32
    %c0_i32_1 = arith.constant 0 : i32
    return %c0_i32, %c0_i32_0 : i32, i32
  }
  func.func @transform_3(%arg0: i32) -> (i32, i32) {
    %c0_i32 = arith.constant 0 : i32
    %c0_i32_0 = arith.constant 0 : i32
    %c0_i32_1 = arith.constant 0 : i32
    return %c0_i32, %c0_i32_0 : i32, i32
  }
  func.func @transform_4(%arg0: i32) -> (i32, i32) {
    %c0_i32 = arith.constant 0 : i32
    %c0_i32_0 = arith.constant 0 : i32
    %c0_i32_1 = arith.constant 0 : i32
    return %c0_i32, %c0_i32_0 : i32, i32
  }
  func.func @transform_5(%arg0: i32) -> (i32, i32) {
    %c0_i32 = arith.constant 0 : i32
    %c0_i32_0 = arith.constant 0 : i32
    return %arg0, %c0_i32 : i32, i32
  }
}

</mosaic_0001>

<llo_original>
// kernel: tpu_custom_call.1
$region0: #{tpu_custom_call.1}
  #allocation0 [shape = 'u32[]', space=smem, size = 0x4, offset = 0x4, fixed_abs, tag = 'smem constant byte address 0x4 - core index']
  #allocation1 [shape = 'u32[72,128]{1,0:T(1,128)}', space=vmem, size = 0x9000, scoped, tag = 'internal scratch']
  %s0 = inlined_call_operand.hbm [shape: f32[16,32], index: 0, kind: input, shape index: {}]
  %s1 = inlined_call_operand.hbm [shape: f32[32,64], index: 1, kind: input, shape index: {}]
  %s2 = inlined_call_operand.hbm [shape: f32[3,64], index: 2, kind: input, shape index: {}]
  %s3 = inlined_call_operand.hbm [shape: f32[64,128], index: 3, kind: input, shape index: {}]
  %s4 = inlined_call_operand.vmem [shape: f32[1,128], index: 4, kind: input, shape index: {}]
  %s5 = inlined_call_operand.hbm [shape: f32[16,128], index: 5, kind: output, shape index: {}]
  %s6 = sld [smem:[#allocation0]]
  $region46: #{tpu_custom_call.1} parent=0
    _
  %s8 = ssub.s32 1, %s6
  %s9 = scalar_select 0, %s8, %s6
  $region1: #{tpu_custom_call.1} parent=0
    #allocation2 [shape = 'u8[8192]{0}', space=vmem, size = 0x2000, scoped, tag = 'input window, operand 0, single buffered']
    #allocation3 [shape = 's32[1]{0}', space=sflag, size = 0x4, scoped, tag = 'scoped memory for tpu_custom_call.1']
    #allocation4 [shape = 's32[1]{0}', space=sflag, size = 0x4, scoped, tag = 'scoped memory for tpu_custom_call.1']
    #allocation5 [shape = 'u8[16384]{0}', space=vmem, size = 0x4000, scoped, tag = 'input window, operand 1, single buffered']
    #allocation6 [shape = 's32[1]{0}', space=sflag, size = 0x4, scoped, tag = 'scoped memory for tpu_custom_call.1']
    #allocation7 [shape = 'u8[2048]{0}', space=vmem, size = 0x800, scoped, tag = 'input window, operand 2, single buffered']
    #allocation8 [shape = 'u8[32768]{0}', space=vmem, size = 0x8000, scoped, tag = 'input window, operand 3, single buffered']
    #allocation9 [shape = 's32[1]{0}', space=sflag, size = 0x4, scoped, tag = 'scoped memory for tpu_custom_call.1']
    #allocation10 [shape = 'u8[8192]{0}', space=vmem, size = 0x2000, scoped, tag = 'output window, operand 0, single buffered']
    %10 = vsyncpa [#allocation3], 0
    %11 = vsyncpa [#allocation6], 0
    %12 = vsyncpa [#allocation9], 0
    %13 = vsyncpa [#allocation4], 0
    // Predicated region
    $region2: #{tpu_custom_call.1} parent=1 // pred_check
      _
    $region3: #{tpu_custom_call.1} parent=1 // pred_check_branch
      %15 = sbr.rel (0) target = $region5
    $region4: #{tpu_custom_call.1} parent=1 // pred_region
      %17 = vsyncadd [#allocation3], 0
      %s18 = sshll.u32 %s0, 4
      %s19 = int_to_ptr.hbm [resolvable:$true] %s18
      %s20 = sshll.u32 [#allocation2], 4
      %s21 = int_to_ptr.vmem [resolvable:$true] %s20
      %26 = dma.hbm_to_vmem [thread:$0]  %s19, 256, %s21, [#allocation3], 128, 128, 8
    $region5: #{tpu_custom_call.1} parent=1 // pred_fallthru
      _
    // Predicated region
    $region6: #{tpu_custom_call.1} parent=1 // pred_check
      _
    $region7: #{tpu_custom_call.1} parent=1 // pred_check_branch
      %28 = sbr.rel (0) target = $region9
    $region8: #{tpu_custom_call.1} parent=1 // pred_region
      %30 = vsyncadd [#allocation6], 0
      %s31 = sshll.u32 %s1, 4
      %s32 = int_to_ptr.hbm [resolvable:$true] %s31
      %s33 = sshll.u32 [#allocation5], 4
      %s34 = int_to_ptr.vmem [resolvable:$true] %s33
      %39 = dma.hbm_to_vmem [thread:$0]  %s32, 512, %s34, [#allocation6], 128, 128, 8
    $region9: #{tpu_custom_call.1} parent=1 // pred_fallthru
      _
    // Predicated region
    $region10: #{tpu_custom_call.1} parent=1 // pred_check
      _
    $region11: #{tpu_custom_call.1} parent=1 // pred_check_branch
      %41 = sbr.rel (0) target = $region13
    $region12: #{tpu_custom_call.1} parent=1 // pred_region
      %43 = vsyncadd [#allocation6], 0
      %s45 = sshll.u32 %s2, 4
      %s46 = int_to_ptr.hbm [resolvable:$true] %s45
      %s47 = sshll.u32 [#allocation7], 4
      %s48 = int_to_ptr.vmem [resolvable:$true] %s47
      %50 = dma.hbm_to_vmem [thread:$0]  %s46, 64, %s48, [#allocation6]
    $region13: #{tpu_custom_call.1} parent=1 // pred_fallthru
      _
    // Predicated region
    $region14: #{tpu_custom_call.1} parent=1 // pred_check
      _
    $region15: #{tpu_custom_call.1} parent=1 // pred_check_branch
      %52 = sbr.rel (0) target = $region17
    $region16: #{tpu_custom_call.1} parent=1 // pred_region
      %54 = vsyncadd [#allocation9], 0
      %s55 = sshll.u32 %s3, 4
      %s56 = int_to_ptr.hbm [resolvable:$true] %s55
      %s57 = sshll.u32 [#allocation8], 4
      %s58 = int_to_ptr.vmem [resolvable:$true] %s57
      %63 = dma.hbm_to_vmem [thread:$0]  %s56, 1024, %s58, [#allocation9], 128, 128, 8
    $region17: #{tpu_custom_call.1} parent=1 // pred_fallthru
      _
    // Predicated region
    $region18: #{tpu_custom_call.1} parent=1 // pred_check
      _
    $region19: #{tpu_custom_call.1} parent=1 // pred_check_branch
      %65 = sbr.rel (0) target = $region21
    $region20: #{tpu_custom_call.1} parent=1 // pred_region
      _
    $region21: #{tpu_custom_call.1} parent=1 // pred_fallthru
      _
    // Predicated region
    $region22: #{tpu_custom_call.1} parent=1 // pred_check
      _
    $region23: #{tpu_custom_call.1} parent=1 // pred_check_branch
      %67 = sbr.rel (0) target = $region25
    $region24: #{tpu_custom_call.1} parent=1 // pred_region
      %69 = dma.done [#allocation3], 256
    $region25: #{tpu_custom_call.1} parent=1 // pred_fallthru
      _
    // Predicated region
    $region26: #{tpu_custom_call.1} parent=1 // pred_check
      _
    $region27: #{tpu_custom_call.1} parent=1 // pred_check_branch
      %71 = sbr.rel (0) target = $region29
    $region28: #{tpu_custom_call.1} parent=1 // pred_region
      %73 = dma.done [#allocation6], 512
    $region29: #{tpu_custom_call.1} parent=1 // pred_fallthru
      _
    // Predicated region
    $region30: #{tpu_custom_call.1} parent=1 // pred_check
      _
    $region31: #{tpu_custom_call.1} parent=1 // pred_check_branch
      %75 = sbr.rel (0) target = $region33
    $region32: #{tpu_custom_call.1} parent=1 // pred_region
      %77 = dma.done [#allocation6], 64
    $region33: #{tpu_custom_call.1} parent=1 // pred_fallthru
      _
    // Predicated region
    $region34: #{tpu_custom_call.1} parent=1 // pred_check
      _
    $region35: #{tpu_custom_call.1} parent=1 // pred_check_branch
      %79 = sbr.rel (0) target = $region37
    $region36: #{tpu_custom_call.1} parent=1 // pred_region
      %81 = dma.done [#allocation9], 1024
    $region37: #{tpu_custom_call.1} parent=1 // pred_fallthru
      _
    %v82 = vld [vmem:[#allocation2] sm:$0xff]
    %v83 = vld [vmem:[#allocation2 + $0x8] sm:$0xff]
    %v84 = vld [vmem:[#allocation5] sm:$0xff]
    %v85 = vld [vmem:[#allocation5 + $0x8] sm:$0xff]
    %v86 = vld [vmem:[#allocation5 + $0x10] sm:$0xff]
    %v87 = vld [vmem:[#allocation5 + $0x18] sm:$0xff]
    %v88 = vld [vmem:[#allocation7] sm:$0x1]
    %v89 = vld [vmem:[#allocation7 + $0x1] sm:$0x1]
    %v90 = vld [vmem:[#allocation7 + $0x2] sm:$0x1]
    %v91 = vperm.slane %v88, 0
    %vm92 = vcmask 261120
    %v94 = vsel %vm92, %v82, 0
    %v97 = vsel %vm92, %v83, 0
    %99 = vmatpush.msra.mxu0 0.0
    %100 = vmatpush.msra.mxu0 0.0
    %101 = vmatpush.msra.mxu0 0.0
    %102 = vmatpush.msra.mxu0 0.0
    %103 = vmatpush.msra.mxu0 0.0
    %104 = vmatpush.msra.mxu0 0.0
    %105 = vmatpush.msra.mxu0 0.0
    %106 = vmatpush.msra.mxu0 0.0
    %107 = vmatpush.msra.mxu0 0.0
    %108 = vmatpush.msra.mxu0 0.0
    %109 = vmatpush.msra.mxu0 0.0
    %110 = vmatpush.msra.mxu0 0.0
    %111 = vmatpush.msra.mxu0 %v87
    %112 = vmatpush.msra.mxu0 %v86
    %113 = vmatpush.msra.mxu0 %v85
    %114 = vmatpush.msra.mxu0 %v84
    %115 = vmatmul.f32.gmra.mxu0 %v94
    %v116 = vpop.f32.mrf.mxu0
    %v117 = vadd.f32 %v91, %v116
    %118 = vmatmul.f32.gmra.mxu0 %v97
    %v119 = vpop.f32.mrf.mxu0
    %v120 = vadd.f32 %v91, %v119
    %121 = vdwg.mxu0
    %vm122 = vcmask 523264
    %v123 = vsel %vm122, %v117, 0.0
    %124 = vadd.xlane.f32.xlu0 %v123
    %v125 = vpop.xlane.xlu0 %124
    %v126 = vsel %vm122, %v120, 0.0
    %127 = vadd.xlane.f32.xlu0 %v126
    %v128 = vpop.xlane.xlu0 %127
    %v129 = vrcp.pop 64.0
    %v130 = vmul.f32 64.0, %v129
    %v131 = vsub.f32 1.0, %v130
    %v132 = vmul.f32 %v129, %v131
    %v133 = vadd.f32 %v129, %v132
    %vm134 = vweird.f32 %v129
    %v135 = vsel %vm134, %v129, %v133
    %v136 = vmul.f32 %v125, %v135
    %v137 = vmul.f32 %v128, %v135
    %v138 = vsub.f32 %v117, %v136
    %v139 = vsub.f32 %v120, %v137
    %v140 = vmul.f32 %v138, %v138
    %v141 = vmul.f32 %v139, %v139
    %v142 = vsel %vm122, %v140, 0.0
    %143 = vadd.xlane.f32.xlu0 %v142
    %v144 = vpop.xlane.xlu0 %143
    %v145 = vsel %vm122, %v141, 0.0
    %146 = vadd.xlane.f32.xlu0 %v145
    %v147 = vpop.xlane.xlu0 %146
    %v148 = vmul.f32 %v144, %v135
    %v149 = vmul.f32 %v147, %v135
    %v150 = vadd.f32 %v148, 1e-05
    %v151 = vadd.f32 %v149, 1e-05
    %v152 = vrsqrt.pop %v150
    %v153 = vmul.f32 %v152, %v150
    %v154 = vmul.f32 %v153, %v152
    %v155 = vmul.f32 0.5, %v154
    %v156 = vsub.f32 1.5, %v155
    %v157 = vmul.f32 %v152, %v156
    %vm158 = vweird.f32 %v150
    %vm159 = vweird.f32 %v152
    %vm160 = vmor %vm158, %vm159
    %v161 = vsel %vm160, %v152, %v157
    %v162 = vrsqrt.pop %v151
    %v163 = vmul.f32 %v162, %v151
    %v164 = vmul.f32 %v163, %v162
    %v165 = vmul.f32 0.5, %v164
    %v166 = vsub.f32 1.5, %v165
    %v167 = vmul.f32 %v162, %v166
    %vm168 = vweird.f32 %v151
    %vm169 = vweird.f32 %v162
    %vm170 = vmor %vm168, %vm169
    %v171 = vsel %vm170, %v162, %v167
    %v172 = vmul.f32 %v138, %v161
    %v173 = vmul.f32 %v139, %v171
    %v174 = vperm.slane %v89, 0
    %v175 = vmul.f32 %v172, %v174
    %v176 = vmul.f32 %v173, %v174
    %v177 = vperm.slane %v90, 0
    %v178 = vadd.f32 %v175, %v177
    %v179 = vadd.f32 %v176, %v177
    %v180 = vmul.f32 %v178, 0.5
    %v181 = vmul.f32 %v179, 0.5
    %v182 = vmul.f32 %v178, 0.70710677
    %v183 = vmul.f32 %v179, 0.70710677
    %v184 = vmul.f32 %v182, %v182
    %v185 = vmin.f32 16.0, %v184
    %v186 = vmul.f32 %v185, 2.1237322e-06
    %v187 = vadd.f32 %v186, 0.00028619796
    %v188 = vmul.f32 %v185, %v187
    %v189 = vadd.f32 %v188, 0.0036580483
    %v190 = vmul.f32 %v185, %v189
    %v191 = vadd.f32 %v190, 0.05243302
    %v192 = vmul.f32 %v185, %v191
    %v193 = vadd.f32 %v192, 0.18741608
    %v194 = vmul.f32 %v185, %v193
    %v195 = vadd.f32 %v194, 1.1283791
    %v196 = vmul.f32 %v182, %v195
    %v197 = vmul.f32 %v185, 3.8918573e-05
    %v198 = vadd.f32 %v197, 0.001143296
    %v199 = vmul.f32 %v185, %v198
    %v200 = vadd.f32 %v199, 0.014752088
    %v201 = vmul.f32 %v185, %v200
    %v202 = vadd.f32 %v201, 0.112945676
    %v203 = vmul.f32 %v185, %v202
    %v204 = vadd.f32 %v203, 0.4994258
    %v205 = vmul.f32 %v185, %v204
    %v206 = vadd.f32 %v205, 1.0
    %v207 = vrcp.pop %v206
    %v208 = vmul.f32 %v206, %v207
    %v209 = vsub.f32 1.0, %v208
    %v210 = vmul.f32 %v207, %v209
    %v211 = vadd.f32 %v207, %v210
    %vm212 = vweird.f32 %v206
    %vm213 = vweird.f32 %v207
    %vm214 = vmor %vm212, %vm213
    %v215 = vsel %vm214, %v207, %v211
    %v216 = vand.u32 2147483647, %v206
    %vm217 = vcmp.eq.f32.partialorder %v216, 8.507059e+37
    %v218 = vand.u32 %v206, 2147483648
    %v219 = vor.u32 1.1754944e-38, %v218
    %v220 = vsel %vm217, %v219, %v215
    %v221 = vmul.f32 %v196, %v220
    %v222 = vmin.f32 %v221, 1.0
    %v223 = vmax.f32 %v222, -1.0
    %v224 = vmul.f32 %v183, %v183
    %v225 = vmin.f32 16.0, %v224
    %v226 = vmul.f32 %v225, 2.1237322e-06
    %v227 = vadd.f32 %v226, 0.00028619796
    %v228 = vmul.f32 %v225, %v227
    %v229 = vadd.f32 %v228, 0.0036580483
    %v230 = vmul.f32 %v225, %v229
    %v231 = vadd.f32 %v230, 0.05243302
    %v232 = vmul.f32 %v225, %v231
    %v233 = vadd.f32 %v232, 0.18741608
    %v234 = vmul.f32 %v225, %v233
    %v235 = vadd.f32 %v234, 1.1283791
    %v236 = vmul.f32 %v183, %v235
    %v237 = vmul.f32 %v225, 3.8918573e-05
    %v238 = vadd.f32 %v237, 0.001143296
    %v239 = vmul.f32 %v225, %v238
    %v240 = vadd.f32 %v239, 0.014752088
    %v241 = vmul.f32 %v225, %v240
    %v242 = vadd.f32 %v241, 0.112945676
    %v243 = vmul.f32 %v225, %v242
    %v244 = vadd.f32 %v243, 0.4994258
    %v245 = vmul.f32 %v225, %v244
    %v246 = vadd.f32 %v245, 1.0
    %v247 = vrcp.pop %v246
    %v248 = vmul.f32 %v246, %v247
    %v249 = vsub.f32 1.0, %v248
    %v250 = vmul.f32 %v247, %v249
    %v251 = vadd.f32 %v247, %v250
    %vm252 = vweird.f32 %v246
    %vm253 = vweird.f32 %v247
    %vm254 = vmor %vm252, %vm253
    %v255 = vsel %vm254, %v247, %v251
    %v256 = vand.u32 2147483647, %v246
    %vm257 = vcmp.eq.f32.partialorder %v256, 8.507059e+37
    %v258 = vand.u32 %v246, 2147483648
    %v259 = vor.u32 1.1754944e-38, %v258
    %v260 = vsel %vm257, %v259, %v255
    %v261 = vmul.f32 %v236, %v260
    %v262 = vmin.f32 %v261, 1.0
    %v263 = vmax.f32 %v262, -1.0
    %v264 = vadd.f32 %v223, 1.0
    %v265 = vadd.f32 %v263, 1.0
    %v266 = vmul.f32 %v180, %v264
    %v267 = vmul.f32 %v181, %v265
    %v268 = vld [vmem:[#allocation8] sm:$0xff]
    %v269 = vld [vmem:[#allocation8 + $0x8] sm:$0xff]
    %v270 = vld [vmem:[#allocation8 + $0x10] sm:$0xff]
    %v271 = vld [vmem:[#allocation8 + $0x18] sm:$0xff]
    %v272 = vld [vmem:[#allocation8 + $0x20] sm:$0xff]
    %v273 = vld [vmem:[#allocation8 + $0x28] sm:$0xff]
    %v274 = vld [vmem:[#allocation8 + $0x30] sm:$0xff]
    %v275 = vld [vmem:[#allocation8 + $0x38] sm:$0xff]
    %v276 = vld [vmem:[%s4] sm:$0x1]
    %v278 = vperm.slane %v276, 0
    %v281 = vsel %vm122, %v266, 0
    %v284 = vsel %vm122, %v267, 0
    %286 = vmatpush.msra.mxu0 0.0
    %287 = vmatpush.msra.mxu0 0.0
    %288 = vmatpush.msra.mxu0 0.0
    %289 = vmatpush.msra.mxu0 0.0
    %290 = vmatpush.msra.mxu0 0.0
    %291 = vmatpush.msra.mxu0 0.0
    %292 = vmatpush.msra.mxu0 0.0
    %293 = vmatpush.msra.mxu0 0.0
    %294 = vmatpush.msra.mxu0 %v275
    %295 = vmatpush.msra.mxu0 %v274
    %296 = vmatpush.msra.mxu0 %v273
    %297 = vmatpush.msra.mxu0 %v272
    %298 = vmatpush.msra.mxu0 %v271
    %299 = vmatpush.msra.mxu0 %v270
    %300 = vmatpush.msra.mxu0 %v269
    %301 = vmatpush.msra.mxu0 %v268
    %302 = vmatmul.f32.gmra.mxu0 %v281
    %v303 = vpop.f32.mrf.mxu0
    %v304 = vadd.f32 %v278, %v303
    %305 = vmatmul.f32.gmra.mxu0 %v284
    %v306 = vpop.f32.mrf.mxu0
    %v307 = vadd.f32 %v278, %v306
    %308 = vdwg.mxu0
    %309 = vst [vmem:[#allocation10] sm:$0xff] %v304
    %310 = vst [vmem:[#allocation10 + $0x8] sm:$0xff] %v307
    // Predicated region
    $region38: #{tpu_custom_call.1} parent=1 // pred_check
      _
    $region39: #{tpu_custom_call.1} parent=1 // pred_check_branch
      %312 = sbr.rel (0) target = $region41
    $region40: #{tpu_custom_call.1} parent=1 // pred_region
      %314 = vsyncadd [#allocation4], 0
      %s315 = sshll.u32 [#allocation10], 4
      %s316 = int_to_ptr.vmem [resolvable:$true] %s315
      %s317 = sshll.u32 %s5, 4
      %s318 = int_to_ptr.hbm [resolvable:$true] %s317
      %323 = dma.vmem_to_hbm [thread:$0]  %s316, 256, %s318, [#allocation4], 128, 128, 8
    $region41: #{tpu_custom_call.1} parent=1 // pred_fallthru
      _
    // Predicated region
    $region42: #{tpu_custom_call.1} parent=1 // pred_check
      _
    $region43: #{tpu_custom_call.1} parent=1 // pred_check_branch
      %325 = sbr.rel (0) target = $region45
    $region44: #{tpu_custom_call.1} parent=1 // pred_region
      %327 = dma.done [#allocation4], 256
    $region45: #{tpu_custom_call.1} parent=1 // pred_fallthru
      _
    %328 = vsyncpa [#allocation3], 1
    %329 = vsyncpa [#allocation6], 1
    %330 = vsyncpa [#allocation9], 1
    %331 = vsyncpa [#allocation4], 1

// kernel: tpu_custom_call.1
$region0: #{tpu_custom_call.1}
  #allocation0 [shape = 'u32[]', space=smem, size = 0x4, offset = 0x4, fixed_abs, tag = 'smem constant byte address 0x4 - core index']
  #allocation1 [shape = 'u32[72,128]{1,0:T(1,128)}', space=vmem, size = 0x9000, scoped, tag = 'internal scratch']
  %s0 = inlined_call_operand.hbm [shape: f32[16,32], index: 0, kind: input, shape index: {}]
  %s1 = inlined_call_operand.hbm [shape: f32[32,64], index: 1, kind: input, shape index: {}]
  %s2 = inlined_call_operand.hbm [shape: f32[3,64], index: 2, kind: input, shape index: {}]
  %s3 = inlined_call_operand.hbm [shape: f32[64,128], index: 3, kind: input, shape index: {}]
  %s4 = inlined_call_operand.vmem [shape: f32[1,128], index: 4, kind: input, shape index: {}]
  %s5 = inlined_call_operand.hbm [shape: f32[16,128], index: 5, kind: output, shape index: {}]
  %s6 = sld [smem:[#allocation0]]
  $region46: #{tpu_custom_call.1} parent=0
    _
  %s8 = ssub.s32 1, %s6
  %s9 = scalar_select 0, %s8, %s6
  $region1: #{tpu_custom_call.1} parent=0
    #allocation2 [shape = 'u8[8192]{0}', space=vmem, size = 0x2000, scoped, tag = 'input window, operand 0, single buffered']
    #allocation3 [shape = 's32[1]{0}', space=sflag, size = 0x4, scoped, tag = 'scoped memory for tpu_custom_call.1']
    #allocation4 [shape = 's32[1]{0}', space=sflag, size = 0x4, scoped, tag = 'scoped memory for tpu_custom_call.1']
    #allocation5 [shape = 'u8[16384]{0}', space=vmem, size = 0x4000, scoped, tag = 'input window, operand 1, single buffered']
    #allocation6 [shape = 's32[1]{0}', space=sflag, size = 0x4, scoped, tag = 'scoped memory for tpu_custom_call.1']
    #allocation7 [shape = 'u8[2048]{0}', space=vmem, size = 0x800, scoped, tag = 'input window, operand 2, single buffered']
    #allocation8 [shape = 'u8[32768]{0}', space=vmem, size = 0x8000, scoped, tag = 'input window, operand 3, single buffered']
    #allocation9 [shape = 's32[1]{0}', space=sflag, size = 0x4, scoped, tag = 'scoped memory for tpu_custom_call.1']
    #allocation10 [shape = 'u8[8192]{0}', space=vmem, size = 0x2000, scoped, tag = 'output window, operand 0, single buffered']
    %10 = vsyncpa [#allocation3], 0
    %11 = vsyncpa [#allocation6], 0
    %12 = vsyncpa [#allocation9], 0
    %13 = vsyncpa [#allocation4], 0
    // Predicated region
    $region2: #{tpu_custom_call.1} parent=1 // pred_check
      _
    $region3: #{tpu_custom_call.1} parent=1 // pred_check_branch
      %15 = sbr.rel (0) target = $region5
    $region4: #{tpu_custom_call.1} parent=1 // pred_region
      %17 = vsyncadd [#allocation3], 0
      %s18 = sshll.u32 %s0, 4
      %s19 = int_to_ptr.hbm [resolvable:$true] %s18
      %s20 = sshll.u32 [#allocation2], 4
      %s21 = int_to_ptr.vmem [resolvable:$true] %s20
      %26 = dma.hbm_to_vmem [thread:$0]  %s19, 256, %s21, [#allocation3], 128, 128, 8
    $region5: #{tpu_custom_call.1} parent=1 // pred_fallthru
      _
    // Predicated region
    $region6: #{tpu_custom_call.1} parent=1 // pred_check
      _
    $region7: #{tpu_custom_call.1} parent=1 // pred_check_branch
      %28 = sbr.rel (0) target = $region9
    $region8: #{tpu_custom_call.1} parent=1 // pred_region
      %30 = vsyncadd [#allocation6], 0
      %s31 = sshll.u32 %s1, 4
      %s32 = int_to_ptr.hbm [resolvable:$true] %s31
      %s33 = sshll.u32 [#allocation5], 4
      %s34 = int_to_ptr.vmem [resolvable:$true] %s33
      %39 = dma.hbm_to_vmem [thread:$0]  %s32, 512, %s34, [#allocation6], 128, 128, 8
    $region9: #{tpu_custom_call.1} parent=1 // pred_fallthru
      _
    // Predicated region
    $region10: #{tpu_custom_call.1} parent=1 // pred_check
      _
    $region11: #{tpu_custom_call.1} parent=1 // pred_check_branch
      %41 = sbr.rel (0) target = $region13
    $region12: #{tpu_custom_call.1} parent=1 // pred_region
      %43 = vsyncadd [#allocation6], 0
      %s45 = sshll.u32 %s2, 4
      %s46 = int_to_ptr.hbm [resolvable:$true] %s45
      %s47 = sshll.u32 [#allocation7], 4
      %s48 = int_to_ptr.vmem [resolvable:$true] %s47
      %50 = dma.hbm_to_vmem [thread:$0]  %s46, 64, %s48, [#allocation6]
    $region13: #{tpu_custom_call.1} parent=1 // pred_fallthru
      _
    // Predicated region
    $region14: #{tpu_custom_call.1} parent=1 // pred_check
      _
    $region15: #{tpu_custom_call.1} parent=1 // pred_check_branch
      %52 = sbr.rel (0) target = $region17
    $region16: #{tpu_custom_call.1} parent=1 // pred_region
      %54 = vsyncadd [#allocation9], 0
      %s55 = sshll.u32 %s3, 4
      %s56 = int_to_ptr.hbm [resolvable:$true] %s55
      %s57 = sshll.u32 [#allocation8], 4
      %s58 = int_to_ptr.vmem [resolvable:$true] %s57
      %63 = dma.hbm_to_vmem [thread:$0]  %s56, 1024, %s58, [#allocation9], 128, 128, 8
    $region17: #{tpu_custom_call.1} parent=1 // pred_fallthru
      _
    // Predicated region
    $region18: #{tpu_custom_call.1} parent=1 // pred_check
      _
    $region19: #{tpu_custom_call.1} parent=1 // pred_check_branch
      %65 = sbr.rel (0) target = $region21
    $region20: #{tpu_custom_call.1} parent=1 // pred_region
      _
    $region21: #{tpu_custom_call.1} parent=1 // pred_fallthru
      _
    // Predicated region
    $region22: #{tpu_custom_call.1} parent=1 // pred_check
      _
    $region23: #{tpu_custom_call.1} parent=1 // pred_check_branch
      %67 = sbr.rel (0) target = $region25
    $region24: #{tpu_custom_call.1} parent=1 // pred_region
      %69 = dma.done [#allocation3], 256
    $region25: #{tpu_custom_call.1} parent=1 // pred_fallthru
      _
    // Predicated region
    $region26: #{tpu_custom_call.1} parent=1 // pred_check
      _
    $region27: #{tpu_custom_call.1} parent=1 // pred_check_branch
      %71 = sbr.rel (0) target = $region29
    $region28: #{tpu_custom_call.1} parent=1 // pred_region
      %73 = dma.done [#allocation6], 512
    $region29: #{tpu_custom_call.1} parent=1 // pred_fallthru
      _
    // Predicated region
    $region30: #{tpu_custom_call.1} parent=1 // pred_check
      _
    $region31: #{tpu_custom_call.1} parent=1 // pred_check_branch
      %75 = sbr.rel (0) target = $region33
    $region32: #{tpu_custom_call.1} parent=1 // pred_region
      %77 = dma.done [#allocation6], 64
    $region33: #{tpu_custom_call.1} parent=1 // pred_fallthru
      _
    // Predicated region
    $region34: #{tpu_custom_call.1} parent=1 // pred_check
      _
    $region35: #{tpu_custom_call.1} parent=1 // pred_check_branch
      %79 = sbr.rel (0) target = $region37
    $region36: #{tpu_custom_call.1} parent=1 // pred_region
      %81 = dma.done [#allocation9], 1024
    $region37: #{tpu_custom_call.1} parent=1 // pred_fallthru
      _
    %v82 = vld [vmem:[#allocation2] sm:$0xff]
    %v83 = vld [vmem:[#allocation2 + $0x8] sm:$0xff]
    %v84 = vld [vmem:[#allocation5] sm:$0xff]
    %v85 = vld [vmem:[#allocation5 + $0x8] sm:$0xff]
    %v86 = vld [vmem:[#allocation5 + $0x10] sm:$0xff]
    %v87 = vld [vmem:[#allocation5 + $0x18] sm:$0xff]
    %v88 = vld [vmem:[#allocation7] sm:$0x1]
    %v89 = vld [vmem:[#allocation7 + $0x1] sm:$0x1]
    %v90 = vld [vmem:[#allocation7 + $0x2] sm:$0x1]
    %v91 = vperm.slane %v88, 0
    %vm92 = vcmask 261120
    %v94 = vsel %vm92, %v82, 0
    %v97 = vsel %vm92, %v83, 0
    %99 = vmatpush.msra.mxu0 0.0
    %100 = vmatpush.msra.mxu0 0.0
    %101 = vmatpush.msra.mxu0 0.0
    %102 = vmatpush.msra.mxu0 0.0
    %103 = vmatpush.msra.mxu0 0.0
    %104 = vmatpush.msra.mxu0 0.0
    %105 = vmatpush.msra.mxu0 0.0
    %106 = vmatpush.msra.mxu0 0.0
    %107 = vmatpush.msra.mxu0 0.0
    %108 = vmatpush.msra.mxu0 0.0
    %109 = vmatpush.msra.mxu0 0.0
    %110 = vmatpush.msra.mxu0 0.0
    %111 = vmatpush.msra.mxu0 %v87
    %112 = vmatpush.msra.mxu0 %v86
    %113 = vmatpush.msra.mxu0 %v85
    %114 = vmatpush.msra.mxu0 %v84
    %115 = vmatmul.f32.gmra.mxu0 %v94
    %v116 = vpop.f32.mrf.mxu0
    %v117 = vadd.f32 %v91, %v116
    %118 = vmatmul.f32.gmra.mxu0 %v97
    %v119 = vpop.f32.mrf.mxu0
    %v120 = vadd.f32 %v91, %v119
    %121 = vdwg.mxu0
    %vm122 = vcmask 523264
    %v123 = vsel %vm122, %v117, 0.0
    %124 = vadd.xlane.f32.xlu0 %v123
    %v125 = vpop.xlane.xlu0 %124
    %v126 = vsel %vm122, %v120, 0.0
    %127 = vadd.xlane.f32.xlu0 %v126
    %v128 = vpop.xlane.xlu0 %127
    %v129 = vrcp.pop 64.0
    %v130 = vmul.f32 64.0, %v129
    %v131 = vsub.f32 1.0, %v130
    %v132 = vmul.f32 %v129, %v131
    %v133 = vadd.f32 %v129, %v132
    %vm134 = vweird.f32 %v129
    %v135 = vsel %vm134, %v129, %v133
    %v136 = vmul.f32 %v125, %v135
    %v137 = vmul.f32 %v128, %v135
    %v138 = vsub.f32 %v117, %v136
    %v139 = vsub.f32 %v120, %v137
    %v140 = vmul.f32 %v138, %v138
    %v141 = vmul.f32 %v139, %v139
    %v142 = vsel %vm122, %v140, 0.0
    %143 = vadd.xlane.f32.xlu0 %v142
    %v144 = vpop.xlane.xlu0 %143
    %v145 = vsel %vm122, %v141, 0.0
    %146 = vadd.xlane.f32.xlu0 %v145
    %v147 = vpop.xlane.xlu0 %146
    %v148 = vmul.f32 %v144, %v135
    %v149 = vmul.f32 %v147, %v135
    %v150 = vadd.f32 %v148, 1e-05
    %v151 = vadd.f32 %v149, 1e-05
    %v152 = vrsqrt.pop %v150
    %v153 = vmul.f32 %v152, %v150
    %v154 = vmul.f32 %v153, %v152
    %v155 = vmul.f32 0.5, %v154
    %v156 = vsub.f32 1.5, %v155
    %v157 = vmul.f32 %v152, %v156
    %vm158 = vweird.f32 %v150
    %vm159 = vweird.f32 %v152
    %vm160 = vmor %vm158, %vm159
    %v161 = vsel %vm160, %v152, %v157
    %v162 = vrsqrt.pop %v151
    %v163 = vmul.f32 %v162, %v151
    %v164 = vmul.f32 %v163, %v162
    %v165 = vmul.f32 0.5, %v164
    %v166 = vsub.f32 1.5, %v165
    %v167 = vmul.f32 %v162, %v166
    %vm168 = vweird.f32 %v151
    %vm169 = vweird.f32 %v162
    %vm170 = vmor %vm168, %vm169
    %v171 = vsel %vm170, %v162, %v167
    %v172 = vmul.f32 %v138, %v161
    %v173 = vmul.f32 %v139, %v171
    %v174 = vperm.slane %v89, 0
    %v175 = vmul.f32 %v172, %v174
    %v176 = vmul.f32 %v173, %v174
    %v177 = vperm.slane %v90, 0
    %v178 = vadd.f32 %v175, %v177
    %v179 = vadd.f32 %v176, %v177
    %v180 = vmul.f32 %v178, 0.5
    %v181 = vmul.f32 %v179, 0.5
    %v182 = vmul.f32 %v178, 0.70710677
    %v183 = vmul.f32 %v179, 0.70710677
    %v184 = vmul.f32 %v182, %v182
    %v185 = vmin.f32 16.0, %v184
    %v186 = vmul.f32 %v185, 2.1237322e-06
    %v187 = vadd.f32 %v186, 0.00028619796
    %v188 = vmul.f32 %v185, %v187
    %v189 = vadd.f32 %v188, 0.0036580483
    %v190 = vmul.f32 %v185, %v189
    %v191 = vadd.f32 %v190, 0.05243302
    %v192 = vmul.f32 %v185, %v191
    %v193 = vadd.f32 %v192, 0.18741608
    %v194 = vmul.f32 %v185, %v193
    %v195 = vadd.f32 %v194, 1.1283791
    %v196 = vmul.f32 %v182, %v195
    %v197 = vmul.f32 %v185, 3.8918573e-05
    %v198 = vadd.f32 %v197, 0.001143296
    %v199 = vmul.f32 %v185, %v198
    %v200 = vadd.f32 %v199, 0.014752088
    %v201 = vmul.f32 %v185, %v200
    %v202 = vadd.f32 %v201, 0.112945676
    %v203 = vmul.f32 %v185, %v202
    %v204 = vadd.f32 %v203, 0.4994258
    %v205 = vmul.f32 %v185, %v204
    %v206 = vadd.f32 %v205, 1.0
    %v207 = vrcp.pop %v206
    %v208 = vmul.f32 %v206, %v207
    %v209 = vsub.f32 1.0, %v208
    %v210 = vmul.f32 %v207, %v209
    %v211 = vadd.f32 %v207, %v210
    %vm212 = vweird.f32 %v206
    %vm213 = vweird.f32 %v207
    %vm214 = vmor %vm212, %vm213
    %v215 = vsel %vm214, %v207, %v211
    %v216 = vand.u32 2147483647, %v206
    %vm217 = vcmp.eq.f32.partialorder %v216, 8.507059e+37
    %v218 = vand.u32 %v206, 2147483648
    %v219 = vor.u32 1.1754944e-38, %v218
    %v220 = vsel %vm217, %v219, %v215
    %v221 = vmul.f32 %v196, %v220
    %v222 = vmin.f32 %v221, 1.0
    %v223 = vmax.f32 %v222, -1.0
    %v224 = vmul.f32 %v183, %v183
    %v225 = vmin.f32 16.0, %v224
    %v226 = vmul.f32 %v225, 2.1237322e-06
    %v227 = vadd.f32 %v226, 0.00028619796
    %v228 = vmul.f32 %v225, %v227
    %v229 = vadd.f32 %v228, 0.0036580483
    %v230 = vmul.f32 %v225, %v229
    %v231 = vadd.f32 %v230, 0.05243302
    %v232 = vmul.f32 %v225, %v231
    %v233 = vadd.f32 %v232, 0.18741608
    %v234 = vmul.f32 %v225, %v233
    %v235 = vadd.f32 %v234, 1.1283791
    %v236 = vmul.f32 %v183, %v235
    %v237 = vmul.f32 %v225, 3.8918573e-05
    %v238 = vadd.f32 %v237, 0.001143296
    %v239 = vmul.f32 %v225, %v238
    %v240 = vadd.f32 %v239, 0.014752088
    %v241 = vmul.f32 %v225, %v240
    %v242 = vadd.f32 %v241, 0.112945676
    %v243 = vmul.f32 %v225, %v242
    %v244 = vadd.f32 %v243, 0.4994258
    %v245 = vmul.f32 %v225, %v244
    %v246 = vadd.f32 %v245, 1.0
    %v247 = vrcp.pop %v246
    %v248 = vmul.f32 %v246, %v247
    %v249 = vsub.f32 1.0, %v248
    %v250 = vmul.f32 %v247, %v249
    %v251 = vadd.f32 %v247, %v250
    %vm252 = vweird.f32 %v246
    %vm253 = vweird.f32 %v247
    %vm254 = vmor %vm252, %vm253
    %v255 = vsel %vm254, %v247, %v251
    %v256 = vand.u32 2147483647, %v246
    %vm257 = vcmp.eq.f32.partialorder %v256, 8.507059e+37
    %v258 = vand.u32 %v246, 2147483648
    %v259 = vor.u32 1.1754944e-38, %v258
    %v260 = vsel %vm257, %v259, %v255
    %v261 = vmul.f32 %v236, %v260
    %v262 = vmin.f32 %v261, 1.0
    %v263 = vmax.f32 %v262, -1.0
    %v264 = vadd.f32 %v223, 1.0
    %v265 = vadd.f32 %v263, 1.0
    %v266 = vmul.f32 %v180, %v264
    %v267 = vmul.f32 %v181, %v265
    %v268 = vld [vmem:[#allocation8] sm:$0xff]
    %v269 = vld [vmem:[#allocation8 + $0x8] sm:$0xff]
    %v270 = vld [vmem:[#allocation8 + $0x10] sm:$0xff]
    %v271 = vld [vmem:[#allocation8 + $0x18] sm:$0xff]
    %v272 = vld [vmem:[#allocation8 + $0x20] sm:$0xff]
    %v273 = vld [vmem:[#allocation8 + $0x28] sm:$0xff]
    %v274 = vld [vmem:[#allocation8 + $0x30] sm:$0xff]
    %v275 = vld [vmem:[#allocation8 + $0x38] sm:$0xff]
    %v276 = vld [vmem:[%s4] sm:$0x1]
    %v278 = vperm.slane %v276, 0
    %v281 = vsel %vm122, %v266, 0
    %v284 = vsel %vm122, %v267, 0
    %286 = vmatpush.msra.mxu0 0.0
    %287 = vmatpush.msra.mxu0 0.0
    %288 = vmatpush.msra.mxu0 0.0
    %289 = vmatpush.msra.mxu0 0.0
    %290 = vmatpush.msra.mxu0 0.0
    %291 = vmatpush.msra.mxu0 0.0
    %292 = vmatpush.msra.mxu0 0.0
    %293 = vmatpush.msra.mxu0 0.0
    %294 = vmatpush.msra.mxu0 %v275
    %295 = vmatpush.msra.mxu0 %v274
    %296 = vmatpush.msra.mxu0 %v273
    %297 = vmatpush.msra.mxu0 %v272
    %298 = vmatpush.msra.mxu0 %v271
    %299 = vmatpush.msra.mxu0 %v270
    %300 = vmatpush.msra.mxu0 %v269
    %301 = vmatpush.msra.mxu0 %v268
    %302 = vmatmul.f32.gmra.mxu0 %v281
    %v303 = vpop.f32.mrf.mxu0
    %v304 = vadd.f32 %v278, %v303
    %305 = vmatmul.f32.gmra.mxu0 %v284
    %v306 = vpop.f32.mrf.mxu0
    %v307 = vadd.f32 %v278, %v306
    %308 = vdwg.mxu0
    %309 = vst [vmem:[#allocation10] sm:$0xff] %v304
    %310 = vst [vmem:[#allocation10 + $0x8] sm:$0xff] %v307
    // Predicated region
    $region38: #{tpu_custom_call.1} parent=1 // pred_check
      _
    $region39: #{tpu_custom_call.1} parent=1 // pred_check_branch
      %312 = sbr.rel (0) target = $region41
    $region40: #{tpu_custom_call.1} parent=1 // pred_region
      %314 = vsyncadd [#allocation4], 0
      %s315 = sshll.u32 [#allocation10], 4
      %s316 = int_to_ptr.vmem [resolvable:$true] %s315
      %s317 = sshll.u32 %s5, 4
      %s318 = int_to_ptr.hbm [resolvable:$true] %s317
      %323 = dma.vmem_to_hbm [thread:$0]  %s316, 256, %s318, [#allocation4], 128, 128, 8
    $region41: #{tpu_custom_call.1} parent=1 // pred_fallthru
      _
    // Predicated region
    $region42: #{tpu_custom_call.1} parent=1 // pred_check
      _
    $region43: #{tpu_custom_call.1} parent=1 // pred_check_branch
      %325 = sbr.rel (0) target = $region45
    $region44: #{tpu_custom_call.1} parent=1 // pred_region
      %327 = dma.done [#allocation4], 256
    $region45: #{tpu_custom_call.1} parent=1 // pred_fallthru
      _
    %328 = vsyncpa [#allocation3], 1
    %329 = vsyncpa [#allocation6], 1
    %330 = vsyncpa [#allocation9], 1
    %331 = vsyncpa [#allocation4], 1

</llo_original>
